<compile_context>
chip_gen: v7x
topology: tpu7x:2x2x1
jax: 0.10.0
libtpu: 0.0.40
codegen_flags: <defaults>
</compile_context>

<pallas_src>
import math

import jax
import jax.numpy as jnp
from jax.experimental import pallas as pl
from jax.experimental.pallas import tpu as pltpu

# ---- config (mirrors the module's config object) -------------------------
ROUTER_INPUT_DIM = 32
ROUTER_HIDDEN_DIM = 32
ROUTER_BLOCK_NUM = 16
BATCH = 2
LANE = 128                      # output padded to one full lane tile

# ---- packed parameter slab layout (rows x 128 lanes, f32, built at init) --
#   rows  0:32   cols 0:32  -> w1   (input_dim x hidden_dim)
#   row   32     cols 0:32  -> b1   (rows 33:40 zero pad, sublane alignment)
#   rows 40:72   cols 0:128 -> w2 zero-padded to 128 output lanes
#   row   72     cols 0:128 -> b2 zero-padded to 128 output lanes
_B1_ROW = 32
_W2_R0, _W2_R1 = 40, 72
_B2_ROW = 72
SLAB_ROWS = 80


def _erf(x):
    # Abramowitz & Stegun 7.1.26, |error| <= 1.5e-7.
    a1, a2, a3, a4, a5 = (0.254829592, -0.284496736, 1.421413741,
                          -1.453152027, 1.061405429)
    p = 0.3275911
    z = jnp.abs(x)
    d = 1.0 + p * z
    # EUP approx reciprocal (vrcp, ~2^-12 rel err) + one Newton step -> ~f32
    # exact, avoids the multi-op f32 divide sequence on the VPU critical path.
    r = pl.reciprocal(d, approx=True)
    t = r * (2.0 - d * r)
    poly = ((((a5 * t + a4) * t + a3) * t + a2) * t + a1) * t
    y = 1.0 - poly * jnp.exp(-z * z)
    return jnp.where(x >= 0.0, y, -y)


def _gelu_exact(x):
    # Matches torch.nn.functional.gelu default (erf-based, not tanh approx).
    return 0.5 * x * (1.0 + _erf(x * (1.0 / math.sqrt(2.0))))


def router_unit_kernel(x_ref, p_ref, o_ref):
    # Static sub-views of the packed parameter slab (free).
    w1 = p_ref[0:ROUTER_INPUT_DIM, 0:ROUTER_HIDDEN_DIM]
    b1 = p_ref[_B1_ROW:_B1_ROW + 1, 0:ROUTER_HIDDEN_DIM]
    w2 = p_ref[_W2_R0:_W2_R1, :]          # (hidden, 128) lane-padded
    b2 = p_ref[_B2_ROW:_B2_ROW + 1, :]    # (1, 128)     lane-padded

    hi = jax.lax.Precision.HIGHEST        # pinned: deterministic true-f32 MXU
    h = jnp.dot(x_ref[...], w1, preferred_element_type=jnp.float32,
                precision=hi) + b1
    h = _gelu_exact(h)
    # linear2: weights/bias are lane-padded to 128 cols -> unmasked lane-dense
    # store of the full (B, 128) output tile.
    o_ref[...] = jnp.dot(h, w2, preferred_element_type=jnp.float32,
                         precision=hi) + b2


def router_unit_forward(x, slab):
    """x: (B, router_input_dim) f32; slab: packed (80, 128) f32 params.
    Returns the lane-padded (B, 128) output (first router_block_num cols valid)."""
    B = x.shape[0]
    flops = 2 * B * ROUTER_INPUT_DIM * ROUTER_HIDDEN_DIM \
        + 2 * B * ROUTER_HIDDEN_DIM * LANE
    bytes_accessed = (x.size + SLAB_ROWS * LANE + B * LANE) * 4
    vmem = pl.BlockSpec(memory_space=pltpu.MemorySpace.VMEM)
    return pl.pallas_call(
        router_unit_kernel,
        out_shape=jax.ShapeDtypeStruct((B, LANE), jnp.float32),
        in_specs=[vmem, vmem],
        out_specs=vmem,
        cost_estimate=pl.CostEstimate(flops=flops,
                                      transcendentals=2 * B * ROUTER_HIDDEN_DIM,
                                      bytes_accessed=bytes_accessed),
    )(x, slab)


@jax.jit
def router_unit_apply(x, slab):
    # Slice back to router_block_num inside the surrounding jit (fusible).
    return router_unit_forward(x, slab)[:, :ROUTER_BLOCK_NUM]


# ---- deterministic synthetic parameter init (math layout: y = x @ W + b) ---
def init_params(key):
    ks = jax.random.split(key, 4)

    def lin(k, fan_in, shape):
        bound = 1.0 / math.sqrt(fan_in)
        return jax.random.uniform(k, shape, jnp.float32, -bound, bound)

    w1 = lin(ks[0], ROUTER_INPUT_DIM, (ROUTER_INPUT_DIM, ROUTER_HIDDEN_DIM))
    b1 = lin(ks[1], ROUTER_INPUT_DIM, (ROUTER_HIDDEN_DIM,))
    w2 = lin(ks[2], ROUTER_HIDDEN_DIM, (ROUTER_HIDDEN_DIM, ROUTER_BLOCK_NUM))
    b2 = lin(ks[3], ROUTER_HIDDEN_DIM, (ROUTER_BLOCK_NUM,))

    # One-time packing + lane padding (hoisted out of the per-call path).
    slab = jnp.zeros((SLAB_ROWS, LANE), jnp.float32)
    slab = slab.at[0:ROUTER_INPUT_DIM, 0:ROUTER_HIDDEN_DIM].set(w1)
    slab = slab.at[_B1_ROW, 0:ROUTER_HIDDEN_DIM].set(b1)
    slab = slab.at[_W2_R0:_W2_R1, 0:ROUTER_BLOCK_NUM].set(w2)
    slab = slab.at[_B2_ROW, 0:ROUTER_BLOCK_NUM].set(b2)

    return {"w1": w1, "b1": b1, "w2": w2, "b2": b2, "slab": slab}


# ---- pure-JAX reference (PyTorch semantics) for a sanity check -------------
def reference(x, p):
    hi = jax.lax.Precision.HIGHEST
    h = jnp.dot(x, p["w1"], precision=hi) + p["b1"]
    h = jax.nn.gelu(h, approximate=False)     # exact erf GELU, like F.gelu
    return jnp.dot(h, p["w2"], precision=hi) + p["b2"]


if __name__ == "__main__":
    key = jax.random.PRNGKey(0)
    k_in, k_par = jax.random.split(key)
    x = jax.random.normal(k_in, (BATCH, ROUTER_INPUT_DIM), jnp.float32)
    params = init_params(k_par)

    y = router_unit_apply(x, params["slab"])
    y = jax.block_until_ready(y)

    y_ref = reference(x, params)
    assert y.shape == (BATCH, ROUTER_BLOCK_NUM)
    assert jnp.allclose(y, y_ref, rtol=1e-4, atol=1e-4)
    print("KERNEL_OK")
</pallas_src>

<mosaic_0001>
module attributes {stable_mosaic.version = 11 : i64} {
  func.func @router_unit_kernel(%arg0: memref<2x32xf32, #tpu.memory_space<vmem>>, %arg1: memref<80x128xf32, #tpu.memory_space<vmem>>, %arg2: memref<2x128xf32, #tpu.memory_space<vmem>>) attributes {dimension_semantics = [], scalar_prefetch = 0 : i64, scratch_operands = 0 : i64, tpu.core_type = #tpu.core_type<tc>} {
    %c0 = arith.constant 0 : index
    %c0_0 = arith.constant 0 : index
    %0 = vector.load %arg1[%c0, %c0_0] : memref<80x128xf32, #tpu.memory_space<vmem>>, vector<32x32xf32>
    %c32 = arith.constant 32 : index
    %c0_1 = arith.constant 0 : index
    %1 = vector.load %arg1[%c32, %c0_1] : memref<80x128xf32, #tpu.memory_space<vmem>>, vector<1x32xf32>
    %c40 = arith.constant 40 : index
    %c0_2 = arith.constant 0 : index
    %2 = vector.load %arg1[%c40, %c0_2] : memref<80x128xf32, #tpu.memory_space<vmem>>, vector<32x128xf32>
    %c72 = arith.constant 72 : index
    %c0_3 = arith.constant 0 : index
    %3 = vector.load %arg1[%c72, %c0_3] : memref<80x128xf32, #tpu.memory_space<vmem>>, vector<1x128xf32>
    %c0_4 = arith.constant 0 : index
    %c0_5 = arith.constant 0 : index
    %4 = vector.load %arg0[%c0_4, %c0_5] : memref<2x32xf32, #tpu.memory_space<vmem>>, vector<2x32xf32>
    %cst = arith.constant dense<0.000000e+00> : vector<2x32xf32>
    %5 = tpu.matmul %4, %0, %cst {dimension_numbers = #tpu.dot_dimension_numbers<[1], [0], [0], [1], [0, 0, 1, 1], [], []>, precision = #tpu.contract_precision<fp32>} : vector<2x32xf32>, vector<32x32xf32>, vector<2x32xf32> -> vector<2x32xf32>
    %6 = vector.broadcast %1 : vector<1x32xf32> to vector<2x32xf32>
    %7 = arith.addf %5, %6 : vector<2x32xf32>
    %cst_6 = arith.constant 5.000000e-01 : f32
    %8 = vector.broadcast %cst_6 : f32 to vector<2x32xf32>
    %9 = arith.mulf %8, %7 : vector<2x32xf32>
    %cst_7 = arith.constant 0.707106769 : f32
    %10 = vector.broadcast %cst_7 : f32 to vector<2x32xf32>
    %11 = arith.mulf %7, %10 : vector<2x32xf32>
    %12 = math.absf %11 : vector<2x32xf32>
    %cst_8 = arith.constant 0.327591091 : f32
    %13 = vector.broadcast %cst_8 : f32 to vector<2x32xf32>
    %14 = arith.mulf %13, %12 : vector<2x32xf32>
    %cst_9 = arith.constant 1.000000e+00 : f32
    %15 = vector.broadcast %cst_9 : f32 to vector<2x32xf32>
    %16 = arith.addf %15, %14 : vector<2x32xf32>
    %17 = tpu.reciprocal %16 {approx = true} : vector<2x32xf32> -> vector<2x32xf32>
    %18 = arith.mulf %16, %17 : vector<2x32xf32>
    %cst_10 = arith.constant 2.000000e+00 : f32
    %19 = vector.broadcast %cst_10 : f32 to vector<2x32xf32>
    %20 = arith.subf %19, %18 : vector<2x32xf32>
    %21 = arith.mulf %17, %20 : vector<2x32xf32>
    %cst_11 = arith.constant 1.06140542 : f32
    %22 = vector.broadcast %cst_11 : f32 to vector<2x32xf32>
    %23 = arith.mulf %22, %21 : vector<2x32xf32>
    %cst_12 = arith.constant -1.45315206 : f32
    %24 = vector.broadcast %cst_12 : f32 to vector<2x32xf32>
    %25 = arith.addf %23, %24 : vector<2x32xf32>
    %26 = arith.mulf %25, %21 : vector<2x32xf32>
    %cst_13 = arith.constant 1.42141378 : f32
    %27 = vector.broadcast %cst_13 : f32 to vector<2x32xf32>
    %28 = arith.addf %26, %27 : vector<2x32xf32>
    %29 = arith.mulf %28, %21 : vector<2x32xf32>
    %cst_14 = arith.constant -0.284496725 : f32
    %30 = vector.broadcast %cst_14 : f32 to vector<2x32xf32>
    %31 = arith.addf %29, %30 : vector<2x32xf32>
    %32 = arith.mulf %31, %21 : vector<2x32xf32>
    %cst_15 = arith.constant 0.254829586 : f32
    %33 = vector.broadcast %cst_15 : f32 to vector<2x32xf32>
    %34 = arith.addf %32, %33 : vector<2x32xf32>
    %35 = arith.mulf %34, %21 : vector<2x32xf32>
    %cst_16 = arith.constant 0.000000e+00 : f32
    %36 = vector.broadcast %cst_16 : f32 to vector<2x32xf32>
    %37 = arith.subf %36, %12 : vector<2x32xf32>
    %38 = arith.mulf %37, %12 : vector<2x32xf32>
    %39 = math.exp %38 : vector<2x32xf32>
    %40 = arith.mulf %35, %39 : vector<2x32xf32>
    %cst_17 = arith.constant 1.000000e+00 : f32
    %41 = vector.broadcast %cst_17 : f32 to vector<2x32xf32>
    %42 = arith.subf %41, %40 : vector<2x32xf32>
    %cst_18 = arith.constant 0.000000e+00 : f32
    %43 = vector.broadcast %cst_18 : f32 to vector<2x32xf32>
    %44 = arith.cmpf oge, %11, %43 : vector<2x32xf32>
    %cst_19 = arith.constant 0.000000e+00 : f32
    %45 = vector.broadcast %cst_19 : f32 to vector<2x32xf32>
    %46 = arith.subf %45, %42 : vector<2x32xf32>
    %47 = arith.select %44, %42, %46 : vector<2x32xi1>, vector<2x32xf32>
    %cst_20 = arith.constant 1.000000e+00 : f32
    %48 = vector.broadcast %cst_20 : f32 to vector<2x32xf32>
    %49 = arith.addf %48, %47 : vector<2x32xf32>
    %50 = arith.mulf %9, %49 : vector<2x32xf32>
    %cst_21 = arith.constant dense<0.000000e+00> : vector<2x128xf32>
    %51 = tpu.matmul %50, %2, %cst_21 {dimension_numbers = #tpu.dot_dimension_numbers<[1], [0], [0], [1], [0, 0, 1, 1], [], []>, precision = #tpu.contract_precision<fp32>} : vector<2x32xf32>, vector<32x128xf32>, vector<2x128xf32> -> vector<2x128xf32>
    %52 = vector.broadcast %3 : vector<1x128xf32> to vector<2x128xf32>
    %53 = arith.addf %51, %52 : vector<2x128xf32>
    %c0_22 = arith.constant 0 : index
    %c0_23 = arith.constant 0 : index
    %54 = vector.load %arg2[%c0_22, %c0_23] : memref<2x128xf32, #tpu.memory_space<vmem>>, vector<2x128xf32>
    tpu.vector_store %arg2[%c0_22, %c0_23], %53 {strides = array<i32>} : memref<2x128xf32, #tpu.memory_space<vmem>>, vector<2x128xf32>,
    return
  }
}

</mosaic_0001>

<llo_original>
// kernel: router_unit_apply.1
$region0: #{router_unit_apply.1}
  #allocation0 [shape = 'u32[]', space=smem, size = 0x4, offset = 0x4, fixed_abs, tag = 'smem constant byte address 0x4 - core index']
  #allocation1 [shape = 'u32[144,128]{1,0:T(1,128)}', space=vmem, size = 0x12000, scoped, tag = 'internal scratch']
  %s0 = inlined_call_operand.hbm [shape: f32[2,32], index: 0, kind: input, shape index: {}]
  %s1 = inlined_call_operand.hbm [shape: f32[80,128], index: 1, kind: input, shape index: {}]
  %s2 = inlined_call_operand.hbm [shape: f32[2,128], index: 2, kind: output, shape index: {}]
  %s3 = sld [smem:[#allocation0]]
  $region26: #{router_unit_apply.1} parent=0
    _
  %s5 = ssub.s32 1, %s3
  %s6 = scalar_select 0, %s5, %s3
  $region1: #{router_unit_apply.1} parent=0
    #allocation2 [shape = 'u8[1024]{0}', space=vmem, size = 0x400, scoped, tag = 'input window, operand 0, single buffered']
    #allocation3 [shape = 's32[1]{0}', space=sflag, size = 0x4, scoped, tag = 'scoped memory for router_unit_apply.1']
    #allocation4 [shape = 's32[1]{0}', space=sflag, size = 0x4, scoped, tag = 'scoped memory for router_unit_apply.1']
    #allocation5 [shape = 'u8[40960]{0}', space=vmem, size = 0xa000, scoped, tag = 'input window, operand 1, single buffered']
    #allocation6 [shape = 's32[1]{0}', space=sflag, size = 0x4, scoped, tag = 'scoped memory for router_unit_apply.1']
    #allocation7 [shape = 'u8[1024]{0}', space=vmem, size = 0x400, scoped, tag = 'output window, operand 0, single buffered']
    %7 = vsyncpa [#allocation3], 0
    %8 = vsyncpa [#allocation6], 0
    %9 = vsyncpa [#allocation4], 0
    // Predicated region
    $region2: #{router_unit_apply.1} parent=1 // pred_check
      _
    $region3: #{router_unit_apply.1} parent=1 // pred_check_branch
      %11 = sbr.rel (0) target = $region5
    $region4: #{router_unit_apply.1} parent=1 // pred_region
      %s13 = ssub.s32 32, 32
      %14 = vsyncadd [#allocation3], %s13
      %s16 = sshll.u32 [#allocation2], 4
      %s17 = int_to_ptr.vmem [resolvable:$true] %s16
      %19 = dma.hbm_to_vmem [thread:$0]  %s0, 32, %s17, [#allocation3]
    $region5: #{router_unit_apply.1} parent=1 // pred_fallthru
      _
    // Predicated region
    $region6: #{router_unit_apply.1} parent=1 // pred_check
      _
    $region7: #{router_unit_apply.1} parent=1 // pred_check_branch
      %21 = sbr.rel (0) target = $region9
    $region8: #{router_unit_apply.1} parent=1 // pred_region
      %s23 = ssub.s32 1280, 1280
      %24 = vsyncadd [#allocation6], %s23
      %s25 = sshll.u32 [#allocation5], 4
      %s26 = int_to_ptr.vmem [resolvable:$true] %s25
      %31 = dma.hbm_to_vmem [thread:$0]  %s1, 1280, %s26, [#allocation6], 128, 128, 8
    $region9: #{router_unit_apply.1} parent=1 // pred_fallthru
      _
    // Predicated region
    $region10: #{router_unit_apply.1} parent=1 // pred_check
      _
    $region11: #{router_unit_apply.1} parent=1 // pred_check_branch
      %33 = sbr.rel (0) target = $region13
    $region12: #{router_unit_apply.1} parent=1 // pred_region
      %34 = dma.done [#allocation3], 32
    $region13: #{router_unit_apply.1} parent=1 // pred_fallthru
      _
    // Predicated region
    $region14: #{router_unit_apply.1} parent=1 // pred_check
      _
    $region15: #{router_unit_apply.1} parent=1 // pred_check_branch
      %36 = sbr.rel (0) target = $region17
    $region16: #{router_unit_apply.1} parent=1 // pred_region
      %37 = dma.done [#allocation6], 1280
    $region17: #{router_unit_apply.1} parent=1 // pred_fallthru
      _
    %v38 = vld [vmem:[#allocation5] sm:$0xff]
    %v39 = vld [vmem:[#allocation5 + $0x8] sm:$0xff]
    %v40 = vld [vmem:[#allocation5 + $0x10] sm:$0xff]
    %v41 = vld [vmem:[#allocation5 + $0x18] sm:$0xff]
    %v42 = vld [vmem:[#allocation5 + $0x20] sm:$0x1]
    %v43 = vld [vmem:[#allocation5 + $0x28] sm:$0xff]
    %v44 = vld [vmem:[#allocation5 + $0x30] sm:$0xff]
    %v45 = vld [vmem:[#allocation5 + $0x38] sm:$0xff]
    %v46 = vld [vmem:[#allocation5 + $0x40] sm:$0xff]
    %v47 = vld [vmem:[#allocation5 + $0x48] sm:$0x1]
    %v48 = vld [vmem:[#allocation2] sm:$0x3]
    %v49 = vlaneseq
    %v50 = vshrl.u32 %v49, 7
    %v51 = vsub.s32 0, %v50
    %v52 = vrot.slane %v42, %v51
    %vm53 = vcmask 261120
    %v55 = vsel %vm53, %v48, 0
    %57 = vmatprep.subr.mxu0 0.0
    %v58 = vand.u32 %v38, 4294901760
    %59 = vmatpush1.msra.mxu0 %v58
    %60 = vmatprep.subr.mxu0 0.0
    %v61 = vand.u32 %v39, 4294901760
    %62 = vmatpush1.msra.mxu0 %v61
    %63 = vmatprep.subr.mxu0 0.0
    %v64 = vand.u32 %v40, 4294901760
    %65 = vmatpush1.msra.mxu0 %v64
    %66 = vmatprep.subr.mxu0 0.0
    %v67 = vand.u32 %v41, 4294901760
    %68 = vmatpush1.msra.mxu0 %v67
    %69 = vmatprep.subr.mxu0 0.0
    %70 = vmatpush1.msra.mxu0 0.0
    %71 = vmatprep.subr.mxu0 0.0
    %72 = vmatpush1.msra.mxu0 0.0
    %73 = vmatprep.subr.mxu0 0.0
    %74 = vmatpush1.msra.mxu0 0.0
    %75 = vmatprep.subr.mxu0 0.0
    %76 = vmatpush1.msra.mxu0 0.0
    %77 = vmatprep.subr.mxu0 0.0
    %78 = vmatpush1.msra.mxu0 0.0
    %79 = vmatprep.subr.mxu0 0.0
    %80 = vmatpush1.msra.mxu0 0.0
    %81 = vmatprep.subr.mxu0 0.0
    %82 = vmatpush1.msra.mxu0 0.0
    %83 = vmatprep.subr.mxu0 0.0
    %84 = vmatpush1.msra.mxu0 0.0
    %85 = vmatprep.subr.mxu0 0.0
    %86 = vmatpush1.msra.mxu0 0.0
    %87 = vmatprep.subr.mxu0 0.0
    %88 = vmatpush1.msra.mxu0 0.0
    %89 = vmatprep.subr.mxu0 0.0
    %90 = vmatpush1.msra.mxu0 0.0
    %91 = vmatprep.subr.mxu0 0.0
    %92 = vmatpush1.msra.mxu0 0.0
    %93 = vmatprep.subr.mxu0 0.0
    %94 = vmatpush1.msra.mxu0 0.0
    %95 = vmatprep.subr.mxu0 0.0
    %96 = vmatpush1.msra.mxu0 0.0
    %97 = vmatprep.subr.mxu0 0.0
    %98 = vmatpush1.msra.mxu0 0.0
    %99 = vmatprep.subr.mxu0 0.0
    %100 = vmatpush1.msra.mxu0 0.0
    %101 = vmatprep.subr.mxu0 0.0
    %102 = vmatpush1.msra.mxu0 0.0
    %103 = vmatprep.subr.mxu0 0.0
    %104 = vmatpush1.msra.mxu0 0.0
    %105 = vmatprep.subr.mxu0 0.0
    %106 = vmatpush1.msra.mxu0 0.0
    %107 = vmatprep.subr.mxu0 0.0
    %108 = vmatpush1.msra.mxu0 0.0
    %109 = vmatprep.subr.mxu0 0.0
    %110 = vmatpush1.msra.mxu0 0.0
    %111 = vmatprep.subr.mxu0 0.0
    %112 = vmatpush1.msra.mxu0 0.0
    %113 = vmatprep.subr.mxu0 0.0
    %114 = vmatpush1.msra.mxu0 0.0
    %115 = vmatprep.subr.mxu0 0.0
    %116 = vmatpush1.msra.mxu0 0.0
    %117 = vmatprep.subr.mxu0 0.0
    %118 = vmatpush1.msra.mxu0 0.0
    %119 = vmatprep.subr.mxu0 0.0
    %120 = vmatpush1.msra.mxu0 0.0
    %121 = vmatprep.subr.mxu0 0.0
    %122 = vmatpush1.msra.mxu0 0.0
    %123 = vmatprep.subr.mxu0 0.0
    %124 = vmatpush1.msra.mxu0 0.0
    %125 = vmatprep.mubr.f32.mxu0 0.0
    %v126 = vand.u32 %v55, 4294901760
    %v127 = vsub.f32 %v55, %v126
    %v128 = vand.u32 %v127, 4294901760
    %v129 = vsub.f32 %v127, %v128
    %v130 = vand.u32 %v129, 4294901760
    %131 = vmatmul.mubr.f32.gmra.mrb[0].mxu0 %v130
    %v132 = vpop.f32.mrb[0].mxu0
    %v133 = vadd.f32 %v52, %v132
    %v134 = vpop.f32.mrb[0].mxu0
    %135 = vdwg.mxu0
    %136 = vmatprep.subr.mxu0 0.0
    %v137 = vand.u32 %v38, 4294901760
    %v138 = vsub.f32 %v38, %v137
    %v139 = vand.u32 %v138, 4294901760
    %v140 = vsub.f32 %v138, %v139
    %v141 = vand.u32 %v140, 4294901760
    %142 = vmatpush1.msra.mxu0 %v141
    %143 = vmatprep.subr.mxu0 0.0
    %v144 = vand.u32 %v39, 4294901760
    %v145 = vsub.f32 %v39, %v144
    %v146 = vand.u32 %v145, 4294901760
    %v147 = vsub.f32 %v145, %v146
    %v148 = vand.u32 %v147, 4294901760
    %149 = vmatpush1.msra.mxu0 %v148
    %150 = vmatprep.subr.mxu0 0.0
    %v151 = vand.u32 %v40, 4294901760
    %v152 = vsub.f32 %v40, %v151
    %v153 = vand.u32 %v152, 4294901760
    %v154 = vsub.f32 %v152, %v153
    %v155 = vand.u32 %v154, 4294901760
    %156 = vmatpush1.msra.mxu0 %v155
    %157 = vmatprep.subr.mxu0 0.0
    %v158 = vand.u32 %v41, 4294901760
    %v159 = vsub.f32 %v41, %v158
    %v160 = vand.u32 %v159, 4294901760
    %v161 = vsub.f32 %v159, %v160
    %v162 = vand.u32 %v161, 4294901760
    %163 = vmatpush1.msra.mxu0 %v162
    %164 = vmatprep.subr.mxu0 0.0
    %165 = vmatpush1.msra.mxu0 0.0
    %166 = vmatprep.subr.mxu0 0.0
    %167 = vmatpush1.msra.mxu0 0.0
    %168 = vmatprep.subr.mxu0 0.0
    %169 = vmatpush1.msra.mxu0 0.0
    %170 = vmatprep.subr.mxu0 0.0
    %171 = vmatpush1.msra.mxu0 0.0
    %172 = vmatprep.subr.mxu0 0.0
    %173 = vmatpush1.msra.mxu0 0.0
    %174 = vmatprep.subr.mxu0 0.0
    %175 = vmatpush1.msra.mxu0 0.0
    %176 = vmatprep.subr.mxu0 0.0
    %177 = vmatpush1.msra.mxu0 0.0
    %178 = vmatprep.subr.mxu0 0.0
    %179 = vmatpush1.msra.mxu0 0.0
    %180 = vmatprep.subr.mxu0 0.0
    %181 = vmatpush1.msra.mxu0 0.0
    %182 = vmatprep.subr.mxu0 0.0
    %183 = vmatpush1.msra.mxu0 0.0
    %184 = vmatprep.subr.mxu0 0.0
    %185 = vmatpush1.msra.mxu0 0.0
    %186 = vmatprep.subr.mxu0 0.0
    %187 = vmatpush1.msra.mxu0 0.0
    %188 = vmatprep.subr.mxu0 0.0
    %189 = vmatpush1.msra.mxu0 0.0
    %190 = vmatprep.subr.mxu0 0.0
    %191 = vmatpush1.msra.mxu0 0.0
    %192 = vmatprep.subr.mxu0 0.0
    %193 = vmatpush1.msra.mxu0 0.0
    %194 = vmatprep.subr.mxu0 0.0
    %195 = vmatpush1.msra.mxu0 0.0
    %196 = vmatprep.subr.mxu0 0.0
    %197 = vmatpush1.msra.mxu0 0.0
    %198 = vmatprep.subr.mxu0 0.0
    %199 = vmatpush1.msra.mxu0 0.0
    %200 = vmatprep.subr.mxu0 0.0
    %201 = vmatpush1.msra.mxu0 0.0
    %202 = vmatprep.subr.mxu0 0.0
    %203 = vmatpush1.msra.mxu0 0.0
    %204 = vmatprep.subr.mxu0 0.0
    %205 = vmatpush1.msra.mxu0 0.0
    %206 = vmatprep.subr.mxu0 0.0
    %207 = vmatpush1.msra.mxu0 0.0
    %208 = vmatprep.subr.mxu0 0.0
    %209 = vmatpush1.msra.mxu0 0.0
    %210 = vmatprep.subr.mxu0 0.0
    %211 = vmatpush1.msra.mxu0 0.0
    %212 = vmatprep.subr.mxu0 0.0
    %213 = vmatpush1.msra.mxu0 0.0
    %214 = vmatprep.subr.mxu0 0.0
    %215 = vmatpush1.msra.mxu0 0.0
    %216 = vmatprep.subr.mxu0 0.0
    %217 = vmatpush1.msra.mxu0 0.0
    %218 = vmatprep.subr.mxu0 0.0
    %219 = vmatpush1.msra.mxu0 0.0
    %220 = vmatprep.mubr.f32.mxu0 0.0
    %v221 = vand.u32 %v55, 4294901760
    %222 = vmatmul.mubr.f32.gmra.mrb[0].mxu0 %v221
    %v223 = vpop.f32.mrb[0].mxu0
    %v224 = vadd.f32 %v133, %v223
    %v225 = vpop.f32.mrb[0].mxu0
    %226 = vdwg.mxu0
    %227 = vmatprep.subr.mxu0 0.0
    %v228 = vand.u32 %v38, 4294901760
    %v229 = vsub.f32 %v38, %v228
    %230 = vmatpush1.msra.mxu0 %v229
    %231 = vmatprep.subr.mxu0 0.0
    %v232 = vand.u32 %v39, 4294901760
    %v233 = vsub.f32 %v39, %v232
    %234 = vmatpush1.msra.mxu0 %v233
    %235 = vmatprep.subr.mxu0 0.0
    %v236 = vand.u32 %v40, 4294901760
    %v237 = vsub.f32 %v40, %v236
    %238 = vmatpush1.msra.mxu0 %v237
    %239 = vmatprep.subr.mxu0 0.0
    %v240 = vand.u32 %v41, 4294901760
    %v241 = vsub.f32 %v41, %v240
    %242 = vmatpush1.msra.mxu0 %v241
    %243 = vmatprep.subr.mxu0 0.0
    %244 = vmatpush1.msra.mxu0 0.0
    %245 = vmatprep.subr.mxu0 0.0
    %246 = vmatpush1.msra.mxu0 0.0
    %247 = vmatprep.subr.mxu0 0.0
    %248 = vmatpush1.msra.mxu0 0.0
    %249 = vmatprep.subr.mxu0 0.0
    %250 = vmatpush1.msra.mxu0 0.0
    %251 = vmatprep.subr.mxu0 0.0
    %252 = vmatpush1.msra.mxu0 0.0
    %253 = vmatprep.subr.mxu0 0.0
    %254 = vmatpush1.msra.mxu0 0.0
    %255 = vmatprep.subr.mxu0 0.0
    %256 = vmatpush1.msra.mxu0 0.0
    %257 = vmatprep.subr.mxu0 0.0
    %258 = vmatpush1.msra.mxu0 0.0
    %259 = vmatprep.subr.mxu0 0.0
    %260 = vmatpush1.msra.mxu0 0.0
    %261 = vmatprep.subr.mxu0 0.0
    %262 = vmatpush1.msra.mxu0 0.0
    %263 = vmatprep.subr.mxu0 0.0
    %264 = vmatpush1.msra.mxu0 0.0
    %265 = vmatprep.subr.mxu0 0.0
    %266 = vmatpush1.msra.mxu0 0.0
    %267 = vmatprep.subr.mxu0 0.0
    %268 = vmatpush1.msra.mxu0 0.0
    %269 = vmatprep.subr.mxu0 0.0
    %270 = vmatpush1.msra.mxu0 0.0
    %271 = vmatprep.subr.mxu0 0.0
    %272 = vmatpush1.msra.mxu0 0.0
    %273 = vmatprep.subr.mxu0 0.0
    %274 = vmatpush1.msra.mxu0 0.0
    %275 = vmatprep.subr.mxu0 0.0
    %276 = vmatpush1.msra.mxu0 0.0
    %277 = vmatprep.subr.mxu0 0.0
    %278 = vmatpush1.msra.mxu0 0.0
    %279 = vmatprep.subr.mxu0 0.0
    %280 = vmatpush1.msra.mxu0 0.0
    %281 = vmatprep.subr.mxu0 0.0
    %282 = vmatpush1.msra.mxu0 0.0
    %283 = vmatprep.subr.mxu0 0.0
    %284 = vmatpush1.msra.mxu0 0.0
    %285 = vmatprep.subr.mxu0 0.0
    %286 = vmatpush1.msra.mxu0 0.0
    %287 = vmatprep.subr.mxu0 0.0
    %288 = vmatpush1.msra.mxu0 0.0
    %289 = vmatprep.subr.mxu0 0.0
    %290 = vmatpush1.msra.mxu0 0.0
    %291 = vmatprep.subr.mxu0 0.0
    %292 = vmatpush1.msra.mxu0 0.0
    %293 = vmatprep.subr.mxu0 0.0
    %294 = vmatpush1.msra.mxu0 0.0
    %295 = vmatprep.subr.mxu0 0.0
    %296 = vmatpush1.msra.mxu0 0.0
    %297 = vmatprep.subr.mxu0 0.0
    %298 = vmatpush1.msra.mxu0 0.0
    %299 = vmatprep.mubr.f32.mxu0 0.0
    %v300 = vand.u32 %v55, 4294901760
    %v301 = vsub.f32 %v55, %v300
    %302 = vmatmul.mubr.f32.gmra.mrb[0].mxu0 %v301
    %v303 = vpop.f32.mrb[0].mxu0
    %v304 = vadd.f32 %v224, %v303
    %v305 = vpop.f32.mrb[0].mxu0
    %306 = vdwg.mxu0
    %307 = vmatprep.subr.mxu0 0.0
    %v308 = vand.u32 %v38, 4294901760
    %309 = vmatpush1.msra.mxu0 %v308
    %310 = vmatprep.subr.mxu0 0.0
    %v311 = vand.u32 %v39, 4294901760
    %312 = vmatpush1.msra.mxu0 %v311
    %313 = vmatprep.subr.mxu0 0.0
    %v314 = vand.u32 %v40, 4294901760
    %315 = vmatpush1.msra.mxu0 %v314
    %316 = vmatprep.subr.mxu0 0.0
    %v317 = vand.u32 %v41, 4294901760
    %318 = vmatpush1.msra.mxu0 %v317
    %319 = vmatprep.subr.mxu0 0.0
    %320 = vmatpush1.msra.mxu0 0.0
    %321 = vmatprep.subr.mxu0 0.0
    %322 = vmatpush1.msra.mxu0 0.0
    %323 = vmatprep.subr.mxu0 0.0
    %324 = vmatpush1.msra.mxu0 0.0
    %325 = vmatprep.subr.mxu0 0.0
    %326 = vmatpush1.msra.mxu0 0.0
    %327 = vmatprep.subr.mxu0 0.0
    %328 = vmatpush1.msra.mxu0 0.0
    %329 = vmatprep.subr.mxu0 0.0
    %330 = vmatpush1.msra.mxu0 0.0
    %331 = vmatprep.subr.mxu0 0.0
    %332 = vmatpush1.msra.mxu0 0.0
    %333 = vmatprep.subr.mxu0 0.0
    %334 = vmatpush1.msra.mxu0 0.0
    %335 = vmatprep.subr.mxu0 0.0
    %336 = vmatpush1.msra.mxu0 0.0
    %337 = vmatprep.subr.mxu0 0.0
    %338 = vmatpush1.msra.mxu0 0.0
    %339 = vmatprep.subr.mxu0 0.0
    %340 = vmatpush1.msra.mxu0 0.0
    %341 = vmatprep.subr.mxu0 0.0
    %342 = vmatpush1.msra.mxu0 0.0
    %343 = vmatprep.subr.mxu0 0.0
    %344 = vmatpush1.msra.mxu0 0.0
    %345 = vmatprep.subr.mxu0 0.0
    %346 = vmatpush1.msra.mxu0 0.0
    %347 = vmatprep.subr.mxu0 0.0
    %348 = vmatpush1.msra.mxu0 0.0
    %349 = vmatprep.subr.mxu0 0.0
    %350 = vmatpush1.msra.mxu0 0.0
    %351 = vmatprep.subr.mxu0 0.0
    %352 = vmatpush1.msra.mxu0 0.0
    %353 = vmatprep.subr.mxu0 0.0
    %354 = vmatpush1.msra.mxu0 0.0
    %355 = vmatprep.subr.mxu0 0.0
    %356 = vmatpush1.msra.mxu0 0.0
    %357 = vmatprep.subr.mxu0 0.0
    %358 = vmatpush1.msra.mxu0 0.0
    %359 = vmatprep.subr.mxu0 0.0
    %360 = vmatpush1.msra.mxu0 0.0
    %361 = vmatprep.subr.mxu0 0.0
    %362 = vmatpush1.msra.mxu0 0.0
    %363 = vmatprep.subr.mxu0 0.0
    %364 = vmatpush1.msra.mxu0 0.0
    %365 = vmatprep.subr.mxu0 0.0
    %366 = vmatpush1.msra.mxu0 0.0
    %367 = vmatprep.subr.mxu0 0.0
    %368 = vmatpush1.msra.mxu0 0.0
    %369 = vmatprep.subr.mxu0 0.0
    %370 = vmatpush1.msra.mxu0 0.0
    %371 = vmatprep.subr.mxu0 0.0
    %372 = vmatpush1.msra.mxu0 0.0
    %373 = vmatprep.subr.mxu0 0.0
    %374 = vmatpush1.msra.mxu0 0.0
    %375 = vmatprep.mubr.f32.mxu0 0.0
    %v376 = vand.u32 %v55, 4294901760
    %v377 = vsub.f32 %v55, %v376
    %v378 = vand.u32 %v377, 4294901760
    %379 = vmatmul.mubr.f32.gmra.mrb[0].mxu0 %v378
    %v380 = vpop.f32.mrb[0].mxu0
    %v381 = vadd.f32 %v304, %v380
    %v382 = vpop.f32.mrb[0].mxu0
    %383 = vdwg.mxu0
    %384 = vmatprep.subr.mxu0 0.0
    %v385 = vand.u32 %v38, 4294901760
    %v386 = vsub.f32 %v38, %v385
    %v387 = vand.u32 %v386, 4294901760
    %388 = vmatpush1.msra.mxu0 %v387
    %389 = vmatprep.subr.mxu0 0.0
    %v390 = vand.u32 %v39, 4294901760
    %v391 = vsub.f32 %v39, %v390
    %v392 = vand.u32 %v391, 4294901760
    %393 = vmatpush1.msra.mxu0 %v392
    %394 = vmatprep.subr.mxu0 0.0
    %v395 = vand.u32 %v40, 4294901760
    %v396 = vsub.f32 %v40, %v395
    %v397 = vand.u32 %v396, 4294901760
    %398 = vmatpush1.msra.mxu0 %v397
    %399 = vmatprep.subr.mxu0 0.0
    %v400 = vand.u32 %v41, 4294901760
    %v401 = vsub.f32 %v41, %v400
    %v402 = vand.u32 %v401, 4294901760
    %403 = vmatpush1.msra.mxu0 %v402
    %404 = vmatprep.subr.mxu0 0.0
    %405 = vmatpush1.msra.mxu0 0.0
    %406 = vmatprep.subr.mxu0 0.0
    %407 = vmatpush1.msra.mxu0 0.0
    %408 = vmatprep.subr.mxu0 0.0
    %409 = vmatpush1.msra.mxu0 0.0
    %410 = vmatprep.subr.mxu0 0.0
    %411 = vmatpush1.msra.mxu0 0.0
    %412 = vmatprep.subr.mxu0 0.0
    %413 = vmatpush1.msra.mxu0 0.0
    %414 = vmatprep.subr.mxu0 0.0
    %415 = vmatpush1.msra.mxu0 0.0
    %416 = vmatprep.subr.mxu0 0.0
    %417 = vmatpush1.msra.mxu0 0.0
    %418 = vmatprep.subr.mxu0 0.0
    %419 = vmatpush1.msra.mxu0 0.0
    %420 = vmatprep.subr.mxu0 0.0
    %421 = vmatpush1.msra.mxu0 0.0
    %422 = vmatprep.subr.mxu0 0.0
    %423 = vmatpush1.msra.mxu0 0.0
    %424 = vmatprep.subr.mxu0 0.0
    %425 = vmatpush1.msra.mxu0 0.0
    %426 = vmatprep.subr.mxu0 0.0
    %427 = vmatpush1.msra.mxu0 0.0
    %428 = vmatprep.subr.mxu0 0.0
    %429 = vmatpush1.msra.mxu0 0.0
    %430 = vmatprep.subr.mxu0 0.0
    %431 = vmatpush1.msra.mxu0 0.0
    %432 = vmatprep.subr.mxu0 0.0
    %433 = vmatpush1.msra.mxu0 0.0
    %434 = vmatprep.subr.mxu0 0.0
    %435 = vmatpush1.msra.mxu0 0.0
    %436 = vmatprep.subr.mxu0 0.0
    %437 = vmatpush1.msra.mxu0 0.0
    %438 = vmatprep.subr.mxu0 0.0
    %439 = vmatpush1.msra.mxu0 0.0
    %440 = vmatprep.subr.mxu0 0.0
    %441 = vmatpush1.msra.mxu0 0.0
    %442 = vmatprep.subr.mxu0 0.0
    %443 = vmatpush1.msra.mxu0 0.0
    %444 = vmatprep.subr.mxu0 0.0
    %445 = vmatpush1.msra.mxu0 0.0
    %446 = vmatprep.subr.mxu0 0.0
    %447 = vmatpush1.msra.mxu0 0.0
    %448 = vmatprep.subr.mxu0 0.0
    %449 = vmatpush1.msra.mxu0 0.0
    %450 = vmatprep.subr.mxu0 0.0
    %451 = vmatpush1.msra.mxu0 0.0
    %452 = vmatprep.subr.mxu0 0.0
    %453 = vmatpush1.msra.mxu0 0.0
    %454 = vmatprep.subr.mxu0 0.0
    %455 = vmatpush1.msra.mxu0 0.0
    %456 = vmatprep.subr.mxu0 0.0
    %457 = vmatpush1.msra.mxu0 0.0
    %458 = vmatprep.subr.mxu0 0.0
    %459 = vmatpush1.msra.mxu0 0.0
    %460 = vmatprep.mubr.f32.mxu0 0.0
    %v461 = vand.u32 %v55, 4294901760
    %462 = vmatmul.mubr.f32.gmra.mrb[0].mxu0 %v461
    %v463 = vpop.f32.mrb[0].mxu0
    %v464 = vadd.f32 %v381, %v463
    %v465 = vpop.f32.mrb[0].mxu0
    %466 = vdwg.mxu0
    %467 = vmatprep.subr.mxu0 0.0
    %v468 = vand.u32 %v38, 4294901760
    %469 = vmatpush1.msra.mxu0 %v468
    %470 = vmatprep.subr.mxu0 0.0
    %v471 = vand.u32 %v39, 4294901760
    %472 = vmatpush1.msra.mxu0 %v471
    %473 = vmatprep.subr.mxu0 0.0
    %v474 = vand.u32 %v40, 4294901760
    %475 = vmatpush1.msra.mxu0 %v474
    %476 = vmatprep.subr.mxu0 0.0
    %v477 = vand.u32 %v41, 4294901760
    %478 = vmatpush1.msra.mxu0 %v477
    %479 = vmatprep.subr.mxu0 0.0
    %480 = vmatpush1.msra.mxu0 0.0
    %481 = vmatprep.subr.mxu0 0.0
    %482 = vmatpush1.msra.mxu0 0.0
    %483 = vmatprep.subr.mxu0 0.0
    %484 = vmatpush1.msra.mxu0 0.0
    %485 = vmatprep.subr.mxu0 0.0
    %486 = vmatpush1.msra.mxu0 0.0
    %487 = vmatprep.subr.mxu0 0.0
    %488 = vmatpush1.msra.mxu0 0.0
    %489 = vmatprep.subr.mxu0 0.0
    %490 = vmatpush1.msra.mxu0 0.0
    %491 = vmatprep.subr.mxu0 0.0
    %492 = vmatpush1.msra.mxu0 0.0
    %493 = vmatprep.subr.mxu0 0.0
    %494 = vmatpush1.msra.mxu0 0.0
    %495 = vmatprep.subr.mxu0 0.0
    %496 = vmatpush1.msra.mxu0 0.0
    %497 = vmatprep.subr.mxu0 0.0
    %498 = vmatpush1.msra.mxu0 0.0
    %499 = vmatprep.subr.mxu0 0.0
    %500 = vmatpush1.msra.mxu0 0.0
    %501 = vmatprep.subr.mxu0 0.0
    %502 = vmatpush1.msra.mxu0 0.0
    %503 = vmatprep.subr.mxu0 0.0
    %504 = vmatpush1.msra.mxu0 0.0
    %505 = vmatprep.subr.mxu0 0.0
    %506 = vmatpush1.msra.mxu0 0.0
    %507 = vmatprep.subr.mxu0 0.0
    %508 = vmatpush1.msra.mxu0 0.0
    %509 = vmatprep.subr.mxu0 0.0
    %510 = vmatpush1.msra.mxu0 0.0
    %511 = vmatprep.subr.mxu0 0.0
    %512 = vmatpush1.msra.mxu0 0.0
    %513 = vmatprep.subr.mxu0 0.0
    %514 = vmatpush1.msra.mxu0 0.0
    %515 = vmatprep.subr.mxu0 0.0
    %516 = vmatpush1.msra.mxu0 0.0
    %517 = vmatprep.subr.mxu0 0.0
    %518 = vmatpush1.msra.mxu0 0.0
    %519 = vmatprep.subr.mxu0 0.0
    %520 = vmatpush1.msra.mxu0 0.0
    %521 = vmatprep.subr.mxu0 0.0
    %522 = vmatpush1.msra.mxu0 0.0
    %523 = vmatprep.subr.mxu0 0.0
    %524 = vmatpush1.msra.mxu0 0.0
    %525 = vmatprep.subr.mxu0 0.0
    %526 = vmatpush1.msra.mxu0 0.0
    %527 = vmatprep.subr.mxu0 0.0
    %528 = vmatpush1.msra.mxu0 0.0
    %529 = vmatprep.subr.mxu0 0.0
    %530 = vmatpush1.msra.mxu0 0.0
    %531 = vmatprep.subr.mxu0 0.0
    %532 = vmatpush1.msra.mxu0 0.0
    %533 = vmatprep.subr.mxu0 0.0
    %534 = vmatpush1.msra.mxu0 0.0
    %535 = vmatprep.mubr.f32.mxu0 0.0
    %v536 = vand.u32 %v55, 4294901760
    %537 = vmatmul.mubr.f32.gmra.mrb[0].mxu0 %v536
    %v538 = vpop.f32.mrb[0].mxu0
    %v539 = vadd.f32 %v464, %v538
    %v540 = vpop.f32.mrb[0].mxu0
    %541 = vdwg.mxu0
    %v542 = vmul.f32 %v539, 0.5
    %v543 = vmul.f32 %v539, 0.70710677
    %v544 = vand.u32 2147483647, %v543
    %v545 = vmul.f32 %v544, 0.3275911
    %v546 = vadd.f32 %v545, 1.0
    %v547 = vrcp.pop %v546
    %v548 = vmul.f32 %v546, %v547
    %v549 = vsub.f32 2.0, %v548
    %v550 = vmul.f32 %v547, %v549
    %v551 = vmul.f32 %v550, 1.0614054
    %v552 = vadd.f32 %v551, -1.4531521
    %v553 = vmul.f32 %v552, %v550
    %v554 = vadd.f32 %v553, 1.4214138
    %v555 = vmul.f32 %v554, %v550
    %v556 = vadd.f32 %v555, -0.28449672
    %v557 = vmul.f32 %v556, %v550
    %v558 = vadd.f32 %v557, 0.2548296
    %v559 = vmul.f32 %v558, %v550
    %v560 = vsub.f32 0.0, %v544
    %v561 = vmul.f32 %v560, %v544
    %v562 = vmul.f32 %v561, 1.442695
    %v563 = vpow.pop %v562
    %v564 = vmul.f32 %v559, %v563
    %v565 = vsub.f32 1.0, %v564
    %vm566 = vcmp.ge.f32.partialorder %v543, 0.0
    %v567 = vsub.f32 0.0, %v565
    %v568 = vsel %vm566, %v565, %v567
    %v569 = vadd.f32 %v568, 1.0
    %v570 = vmul.f32 %v542, %v569
    %v571 = vlaneseq
    %v572 = vshrl.u32 %v571, 7
    %v573 = vsub.s32 0, %v572
    %v574 = vrot.slane %v47, %v573
    %v576 = vsel %vm53, %v570, 0
    %578 = vmatprep.subr.mxu0 0.0
    %v579 = vand.u32 %v43, 4294901760
    %580 = vmatpush1.msra.mxu0 %v579
    %581 = vmatprep.subr.mxu0 0.0
    %v582 = vand.u32 %v44, 4294901760
    %583 = vmatpush1.msra.mxu0 %v582
    %584 = vmatprep.subr.mxu0 0.0
    %v585 = vand.u32 %v45, 4294901760
    %586 = vmatpush1.msra.mxu0 %v585
    %587 = vmatprep.subr.mxu0 0.0
    %v588 = vand.u32 %v46, 4294901760
    %589 = vmatpush1.msra.mxu0 %v588
    %590 = vmatprep.subr.mxu0 0.0
    %591 = vmatpush1.msra.mxu0 0.0
    %592 = vmatprep.subr.mxu0 0.0
    %593 = vmatpush1.msra.mxu0 0.0
    %594 = vmatprep.subr.mxu0 0.0
    %595 = vmatpush1.msra.mxu0 0.0
    %596 = vmatprep.subr.mxu0 0.0
    %597 = vmatpush1.msra.mxu0 0.0
    %598 = vmatprep.subr.mxu0 0.0
    %599 = vmatpush1.msra.mxu0 0.0
    %600 = vmatprep.subr.mxu0 0.0
    %601 = vmatpush1.msra.mxu0 0.0
    %602 = vmatprep.subr.mxu0 0.0
    %603 = vmatpush1.msra.mxu0 0.0
    %604 = vmatprep.subr.mxu0 0.0
    %605 = vmatpush1.msra.mxu0 0.0
    %606 = vmatprep.subr.mxu0 0.0
    %607 = vmatpush1.msra.mxu0 0.0
    %608 = vmatprep.subr.mxu0 0.0
    %609 = vmatpush1.msra.mxu0 0.0
    %610 = vmatprep.subr.mxu0 0.0
    %611 = vmatpush1.msra.mxu0 0.0
    %612 = vmatprep.subr.mxu0 0.0
    %613 = vmatpush1.msra.mxu0 0.0
    %614 = vmatprep.subr.mxu0 0.0
    %615 = vmatpush1.msra.mxu0 0.0
    %616 = vmatprep.subr.mxu0 0.0
    %617 = vmatpush1.msra.mxu0 0.0
    %618 = vmatprep.subr.mxu0 0.0
    %619 = vmatpush1.msra.mxu0 0.0
    %620 = vmatprep.subr.mxu0 0.0
    %621 = vmatpush1.msra.mxu0 0.0
    %622 = vmatprep.subr.mxu0 0.0
    %623 = vmatpush1.msra.mxu0 0.0
    %624 = vmatprep.subr.mxu0 0.0
    %625 = vmatpush1.msra.mxu0 0.0
    %626 = vmatprep.subr.mxu0 0.0
    %627 = vmatpush1.msra.mxu0 0.0
    %628 = vmatprep.subr.mxu0 0.0
    %629 = vmatpush1.msra.mxu0 0.0
    %630 = vmatprep.subr.mxu0 0.0
    %631 = vmatpush1.msra.mxu0 0.0
    %632 = vmatprep.subr.mxu0 0.0
    %633 = vmatpush1.msra.mxu0 0.0
    %634 = vmatprep.subr.mxu0 0.0
    %635 = vmatpush1.msra.mxu0 0.0
    %636 = vmatprep.subr.mxu0 0.0
    %637 = vmatpush1.msra.mxu0 0.0
    %638 = vmatprep.subr.mxu0 0.0
    %639 = vmatpush1.msra.mxu0 0.0
    %640 = vmatprep.subr.mxu0 0.0
    %641 = vmatpush1.msra.mxu0 0.0
    %642 = vmatprep.subr.mxu0 0.0
    %643 = vmatpush1.msra.mxu0 0.0
    %644 = vmatprep.subr.mxu0 0.0
    %645 = vmatpush1.msra.mxu0 0.0
    %646 = vmatprep.mubr.f32.mxu0 0.0
    %v647 = vand.u32 %v576, 4294901760
    %v648 = vsub.f32 %v576, %v647
    %v649 = vand.u32 %v648, 4294901760
    %v650 = vsub.f32 %v648, %v649
    %v651 = vand.u32 %v650, 4294901760
    %652 = vmatmul.mubr.f32.gmra.mrb[0].mxu0 %v651
    %v653 = vpop.f32.mrb[0].mxu0
    %v654 = vadd.f32 %v574, %v653
    %v655 = vpop.f32.mrb[0].mxu0
    %656 = vdwg.mxu0
    %657 = vmatprep.subr.mxu0 0.0
    %v658 = vand.u32 %v43, 4294901760
    %v659 = vsub.f32 %v43, %v658
    %v660 = vand.u32 %v659, 4294901760
    %v661 = vsub.f32 %v659, %v660
    %v662 = vand.u32 %v661, 4294901760
    %663 = vmatpush1.msra.mxu0 %v662
    %664 = vmatprep.subr.mxu0 0.0
    %v665 = vand.u32 %v44, 4294901760
    %v666 = vsub.f32 %v44, %v665
    %v667 = vand.u32 %v666, 4294901760
    %v668 = vsub.f32 %v666, %v667
    %v669 = vand.u32 %v668, 4294901760
    %670 = vmatpush1.msra.mxu0 %v669
    %671 = vmatprep.subr.mxu0 0.0
    %v672 = vand.u32 %v45, 4294901760
    %v673 = vsub.f32 %v45, %v672
    %v674 = vand.u32 %v673, 4294901760
    %v675 = vsub.f32 %v673, %v674
    %v676 = vand.u32 %v675, 4294901760
    %677 = vmatpush1.msra.mxu0 %v676
    %678 = vmatprep.subr.mxu0 0.0
    %v679 = vand.u32 %v46, 4294901760
    %v680 = vsub.f32 %v46, %v679
    %v681 = vand.u32 %v680, 4294901760
    %v682 = vsub.f32 %v680, %v681
    %v683 = vand.u32 %v682, 4294901760
    %684 = vmatpush1.msra.mxu0 %v683
    %685 = vmatprep.subr.mxu0 0.0
    %686 = vmatpush1.msra.mxu0 0.0
    %687 = vmatprep.subr.mxu0 0.0
    %688 = vmatpush1.msra.mxu0 0.0
    %689 = vmatprep.subr.mxu0 0.0
    %690 = vmatpush1.msra.mxu0 0.0
    %691 = vmatprep.subr.mxu0 0.0
    %692 = vmatpush1.msra.mxu0 0.0
    %693 = vmatprep.subr.mxu0 0.0
    %694 = vmatpush1.msra.mxu0 0.0
    %695 = vmatprep.subr.mxu0 0.0
    %696 = vmatpush1.msra.mxu0 0.0
    %697 = vmatprep.subr.mxu0 0.0
    %698 = vmatpush1.msra.mxu0 0.0
    %699 = vmatprep.subr.mxu0 0.0
    %700 = vmatpush1.msra.mxu0 0.0
    %701 = vmatprep.subr.mxu0 0.0
    %702 = vmatpush1.msra.mxu0 0.0
    %703 = vmatprep.subr.mxu0 0.0
    %704 = vmatpush1.msra.mxu0 0.0
    %705 = vmatprep.subr.mxu0 0.0
    %706 = vmatpush1.msra.mxu0 0.0
    %707 = vmatprep.subr.mxu0 0.0
    %708 = vmatpush1.msra.mxu0 0.0
    %709 = vmatprep.subr.mxu0 0.0
    %710 = vmatpush1.msra.mxu0 0.0
    %711 = vmatprep.subr.mxu0 0.0
    %712 = vmatpush1.msra.mxu0 0.0
    %713 = vmatprep.subr.mxu0 0.0
    %714 = vmatpush1.msra.mxu0 0.0
    %715 = vmatprep.subr.mxu0 0.0
    %716 = vmatpush1.msra.mxu0 0.0
    %717 = vmatprep.subr.mxu0 0.0
    %718 = vmatpush1.msra.mxu0 0.0
    %719 = vmatprep.subr.mxu0 0.0
    %720 = vmatpush1.msra.mxu0 0.0
    %721 = vmatprep.subr.mxu0 0.0
    %722 = vmatpush1.msra.mxu0 0.0
    %723 = vmatprep.subr.mxu0 0.0
    %724 = vmatpush1.msra.mxu0 0.0
    %725 = vmatprep.subr.mxu0 0.0
    %726 = vmatpush1.msra.mxu0 0.0
    %727 = vmatprep.subr.mxu0 0.0
    %728 = vmatpush1.msra.mxu0 0.0
    %729 = vmatprep.subr.mxu0 0.0
    %730 = vmatpush1.msra.mxu0 0.0
    %731 = vmatprep.subr.mxu0 0.0
    %732 = vmatpush1.msra.mxu0 0.0
    %733 = vmatprep.subr.mxu0 0.0
    %734 = vmatpush1.msra.mxu0 0.0
    %735 = vmatprep.subr.mxu0 0.0
    %736 = vmatpush1.msra.mxu0 0.0
    %737 = vmatprep.subr.mxu0 0.0
    %738 = vmatpush1.msra.mxu0 0.0
    %739 = vmatprep.subr.mxu0 0.0
    %740 = vmatpush1.msra.mxu0 0.0
    %741 = vmatprep.mubr.f32.mxu0 0.0
    %v742 = vand.u32 %v576, 4294901760
    %743 = vmatmul.mubr.f32.gmra.mrb[0].mxu0 %v742
    %v744 = vpop.f32.mrb[0].mxu0
    %v745 = vadd.f32 %v654, %v744
    %v746 = vpop.f32.mrb[0].mxu0
    %747 = vdwg.mxu0
    %748 = vmatprep.subr.mxu0 0.0
    %v749 = vand.u32 %v43, 4294901760
    %v750 = vsub.f32 %v43, %v749
    %751 = vmatpush1.msra.mxu0 %v750
    %752 = vmatprep.subr.mxu0 0.0
    %v753 = vand.u32 %v44, 4294901760
    %v754 = vsub.f32 %v44, %v753
    %755 = vmatpush1.msra.mxu0 %v754
    %756 = vmatprep.subr.mxu0 0.0
    %v757 = vand.u32 %v45, 4294901760
    %v758 = vsub.f32 %v45, %v757
    %759 = vmatpush1.msra.mxu0 %v758
    %760 = vmatprep.subr.mxu0 0.0
    %v761 = vand.u32 %v46, 4294901760
    %v762 = vsub.f32 %v46, %v761
    %763 = vmatpush1.msra.mxu0 %v762
    %764 = vmatprep.subr.mxu0 0.0
    %765 = vmatpush1.msra.mxu0 0.0
    %766 = vmatprep.subr.mxu0 0.0
    %767 = vmatpush1.msra.mxu0 0.0
    %768 = vmatprep.subr.mxu0 0.0
    %769 = vmatpush1.msra.mxu0 0.0
    %770 = vmatprep.subr.mxu0 0.0
    %771 = vmatpush1.msra.mxu0 0.0
    %772 = vmatprep.subr.mxu0 0.0
    %773 = vmatpush1.msra.mxu0 0.0
    %774 = vmatprep.subr.mxu0 0.0
    %775 = vmatpush1.msra.mxu0 0.0
    %776 = vmatprep.subr.mxu0 0.0
    %777 = vmatpush1.msra.mxu0 0.0
    %778 = vmatprep.subr.mxu0 0.0
    %779 = vmatpush1.msra.mxu0 0.0
    %780 = vmatprep.subr.mxu0 0.0
    %781 = vmatpush1.msra.mxu0 0.0
    %782 = vmatprep.subr.mxu0 0.0
    %783 = vmatpush1.msra.mxu0 0.0
    %784 = vmatprep.subr.mxu0 0.0
    %785 = vmatpush1.msra.mxu0 0.0
    %786 = vmatprep.subr.mxu0 0.0
    %787 = vmatpush1.msra.mxu0 0.0
    %788 = vmatprep.subr.mxu0 0.0
    %789 = vmatpush1.msra.mxu0 0.0
    %790 = vmatprep.subr.mxu0 0.0
    %791 = vmatpush1.msra.mxu0 0.0
    %792 = vmatprep.subr.mxu0 0.0
    %793 = vmatpush1.msra.mxu0 0.0
    %794 = vmatprep.subr.mxu0 0.0
    %795 = vmatpush1.msra.mxu0 0.0
    %796 = vmatprep.subr.mxu0 0.0
    %797 = vmatpush1.msra.mxu0 0.0
    %798 = vmatprep.subr.mxu0 0.0
    %799 = vmatpush1.msra.mxu0 0.0
    %800 = vmatprep.subr.mxu0 0.0
    %801 = vmatpush1.msra.mxu0 0.0
    %802 = vmatprep.subr.mxu0 0.0
    %803 = vmatpush1.msra.mxu0 0.0
    %804 = vmatprep.subr.mxu0 0.0
    %805 = vmatpush1.msra.mxu0 0.0
    %806 = vmatprep.subr.mxu0 0.0
    %807 = vmatpush1.msra.mxu0 0.0
    %808 = vmatprep.subr.mxu0 0.0
    %809 = vmatpush1.msra.mxu0 0.0
    %810 = vmatprep.subr.mxu0 0.0
    %811 = vmatpush1.msra.mxu0 0.0
    %812 = vmatprep.subr.mxu0 0.0
    %813 = vmatpush1.msra.mxu0 0.0
    %814 = vmatprep.subr.mxu0 0.0
    %815 = vmatpush1.msra.mxu0 0.0
    %816 = vmatprep.subr.mxu0 0.0
    %817 = vmatpush1.msra.mxu0 0.0
    %818 = vmatprep.subr.mxu0 0.0
    %819 = vmatpush1.msra.mxu0 0.0
    %820 = vmatprep.mubr.f32.mxu0 0.0
    %v821 = vand.u32 %v576, 4294901760
    %v822 = vsub.f32 %v576, %v821
    %823 = vmatmul.mubr.f32.gmra.mrb[0].mxu0 %v822
    %v824 = vpop.f32.mrb[0].mxu0
    %v825 = vadd.f32 %v745, %v824
    %v826 = vpop.f32.mrb[0].mxu0
    %827 = vdwg.mxu0
    %828 = vmatprep.subr.mxu0 0.0
    %v829 = vand.u32 %v43, 4294901760
    %830 = vmatpush1.msra.mxu0 %v829
    %831 = vmatprep.subr.mxu0 0.0
    %v832 = vand.u32 %v44, 4294901760
    %833 = vmatpush1.msra.mxu0 %v832
    %834 = vmatprep.subr.mxu0 0.0
    %v835 = vand.u32 %v45, 4294901760
    %836 = vmatpush1.msra.mxu0 %v835
    %837 = vmatprep.subr.mxu0 0.0
    %v838 = vand.u32 %v46, 4294901760
    %839 = vmatpush1.msra.mxu0 %v838
    %840 = vmatprep.subr.mxu0 0.0
    %841 = vmatpush1.msra.mxu0 0.0
    %842 = vmatprep.subr.mxu0 0.0
    %843 = vmatpush1.msra.mxu0 0.0
    %844 = vmatprep.subr.mxu0 0.0
    %845 = vmatpush1.msra.mxu0 0.0
    %846 = vmatprep.subr.mxu0 0.0
    %847 = vmatpush1.msra.mxu0 0.0
    %848 = vmatprep.subr.mxu0 0.0
    %849 = vmatpush1.msra.mxu0 0.0
    %850 = vmatprep.subr.mxu0 0.0
    %851 = vmatpush1.msra.mxu0 0.0
    %852 = vmatprep.subr.mxu0 0.0
    %853 = vmatpush1.msra.mxu0 0.0
    %854 = vmatprep.subr.mxu0 0.0
    %855 = vmatpush1.msra.mxu0 0.0
    %856 = vmatprep.subr.mxu0 0.0
    %857 = vmatpush1.msra.mxu0 0.0
    %858 = vmatprep.subr.mxu0 0.0
    %859 = vmatpush1.msra.mxu0 0.0
    %860 = vmatprep.subr.mxu0 0.0
    %861 = vmatpush1.msra.mxu0 0.0
    %862 = vmatprep.subr.mxu0 0.0
    %863 = vmatpush1.msra.mxu0 0.0
    %864 = vmatprep.subr.mxu0 0.0
    %865 = vmatpush1.msra.mxu0 0.0
    %866 = vmatprep.subr.mxu0 0.0
    %867 = vmatpush1.msra.mxu0 0.0
    %868 = vmatprep.subr.mxu0 0.0
    %869 = vmatpush1.msra.mxu0 0.0
    %870 = vmatprep.subr.mxu0 0.0
    %871 = vmatpush1.msra.mxu0 0.0
    %872 = vmatprep.subr.mxu0 0.0
    %873 = vmatpush1.msra.mxu0 0.0
    %874 = vmatprep.subr.mxu0 0.0
    %875 = vmatpush1.msra.mxu0 0.0
    %876 = vmatprep.subr.mxu0 0.0
    %877 = vmatpush1.msra.mxu0 0.0
    %878 = vmatprep.subr.mxu0 0.0
    %879 = vmatpush1.msra.mxu0 0.0
    %880 = vmatprep.subr.mxu0 0.0
    %881 = vmatpush1.msra.mxu0 0.0
    %882 = vmatprep.subr.mxu0 0.0
    %883 = vmatpush1.msra.mxu0 0.0
    %884 = vmatprep.subr.mxu0 0.0
    %885 = vmatpush1.msra.mxu0 0.0
    %886 = vmatprep.subr.mxu0 0.0
    %887 = vmatpush1.msra.mxu0 0.0
    %888 = vmatprep.subr.mxu0 0.0
    %889 = vmatpush1.msra.mxu0 0.0
    %890 = vmatprep.subr.mxu0 0.0
    %891 = vmatpush1.msra.mxu0 0.0
    %892 = vmatprep.subr.mxu0 0.0
    %893 = vmatpush1.msra.mxu0 0.0
    %894 = vmatprep.subr.mxu0 0.0
    %895 = vmatpush1.msra.mxu0 0.0
    %896 = vmatprep.mubr.f32.mxu0 0.0
    %v897 = vand.u32 %v576, 4294901760
    %v898 = vsub.f32 %v576, %v897
    %v899 = vand.u32 %v898, 4294901760
    %900 = vmatmul.mubr.f32.gmra.mrb[0].mxu0 %v899
    %v901 = vpop.f32.mrb[0].mxu0
    %v902 = vadd.f32 %v825, %v901
    %v903 = vpop.f32.mrb[0].mxu0
    %904 = vdwg.mxu0
    %905 = vmatprep.subr.mxu0 0.0
    %v906 = vand.u32 %v43, 4294901760
    %v907 = vsub.f32 %v43, %v906
    %v908 = vand.u32 %v907, 4294901760
    %909 = vmatpush1.msra.mxu0 %v908
    %910 = vmatprep.subr.mxu0 0.0
    %v911 = vand.u32 %v44, 4294901760
    %v912 = vsub.f32 %v44, %v911
    %v913 = vand.u32 %v912, 4294901760
    %914 = vmatpush1.msra.mxu0 %v913
    %915 = vmatprep.subr.mxu0 0.0
    %v916 = vand.u32 %v45, 4294901760
    %v917 = vsub.f32 %v45, %v916
    %v918 = vand.u32 %v917, 4294901760
    %919 = vmatpush1.msra.mxu0 %v918
    %920 = vmatprep.subr.mxu0 0.0
    %v921 = vand.u32 %v46, 4294901760
    %v922 = vsub.f32 %v46, %v921
    %v923 = vand.u32 %v922, 4294901760
    %924 = vmatpush1.msra.mxu0 %v923
    %925 = vmatprep.subr.mxu0 0.0
    %926 = vmatpush1.msra.mxu0 0.0
    %927 = vmatprep.subr.mxu0 0.0
    %928 = vmatpush1.msra.mxu0 0.0
    %929 = vmatprep.subr.mxu0 0.0
    %930 = vmatpush1.msra.mxu0 0.0
    %931 = vmatprep.subr.mxu0 0.0
    %932 = vmatpush1.msra.mxu0 0.0
    %933 = vmatprep.subr.mxu0 0.0
    %934 = vmatpush1.msra.mxu0 0.0
    %935 = vmatprep.subr.mxu0 0.0
    %936 = vmatpush1.msra.mxu0 0.0
    %937 = vmatprep.subr.mxu0 0.0
    %938 = vmatpush1.msra.mxu0 0.0
    %939 = vmatprep.subr.mxu0 0.0
    %940 = vmatpush1.msra.mxu0 0.0
    %941 = vmatprep.subr.mxu0 0.0
    %942 = vmatpush1.msra.mxu0 0.0
    %943 = vmatprep.subr.mxu0 0.0
    %944 = vmatpush1.msra.mxu0 0.0
    %945 = vmatprep.subr.mxu0 0.0
    %946 = vmatpush1.msra.mxu0 0.0
    %947 = vmatprep.subr.mxu0 0.0
    %948 = vmatpush1.msra.mxu0 0.0
    %949 = vmatprep.subr.mxu0 0.0
    %950 = vmatpush1.msra.mxu0 0.0
    %951 = vmatprep.subr.mxu0 0.0
    %952 = vmatpush1.msra.mxu0 0.0
    %953 = vmatprep.subr.mxu0 0.0
    %954 = vmatpush1.msra.mxu0 0.0
    %955 = vmatprep.subr.mxu0 0.0
    %956 = vmatpush1.msra.mxu0 0.0
    %957 = vmatprep.subr.mxu0 0.0
    %958 = vmatpush1.msra.mxu0 0.0
    %959 = vmatprep.subr.mxu0 0.0
    %960 = vmatpush1.msra.mxu0 0.0
    %961 = vmatprep.subr.mxu0 0.0
    %962 = vmatpush1.msra.mxu0 0.0
    %963 = vmatprep.subr.mxu0 0.0
    %964 = vmatpush1.msra.mxu0 0.0
    %965 = vmatprep.subr.mxu0 0.0
    %966 = vmatpush1.msra.mxu0 0.0
    %967 = vmatprep.subr.mxu0 0.0
    %968 = vmatpush1.msra.mxu0 0.0
    %969 = vmatprep.subr.mxu0 0.0
    %970 = vmatpush1.msra.mxu0 0.0
    %971 = vmatprep.subr.mxu0 0.0
    %972 = vmatpush1.msra.mxu0 0.0
    %973 = vmatprep.subr.mxu0 0.0
    %974 = vmatpush1.msra.mxu0 0.0
    %975 = vmatprep.subr.mxu0 0.0
    %976 = vmatpush1.msra.mxu0 0.0
    %977 = vmatprep.subr.mxu0 0.0
    %978 = vmatpush1.msra.mxu0 0.0
    %979 = vmatprep.subr.mxu0 0.0
    %980 = vmatpush1.msra.mxu0 0.0
    %981 = vmatprep.mubr.f32.mxu0 0.0
    %v982 = vand.u32 %v576, 4294901760
    %983 = vmatmul.mubr.f32.gmra.mrb[0].mxu0 %v982
    %v984 = vpop.f32.mrb[0].mxu0
    %v985 = vadd.f32 %v902, %v984
    %v986 = vpop.f32.mrb[0].mxu0
    %987 = vdwg.mxu0
    %988 = vmatprep.subr.mxu0 0.0
    %v989 = vand.u32 %v43, 4294901760
    %990 = vmatpush1.msra.mxu0 %v989
    %991 = vmatprep.subr.mxu0 0.0
    %v992 = vand.u32 %v44, 4294901760
    %993 = vmatpush1.msra.mxu0 %v992
    %994 = vmatprep.subr.mxu0 0.0
    %v995 = vand.u32 %v45, 4294901760
    %996 = vmatpush1.msra.mxu0 %v995
    %997 = vmatprep.subr.mxu0 0.0
    %v998 = vand.u32 %v46, 4294901760
    %999 = vmatpush1.msra.mxu0 %v998
    %1000 = vmatprep.subr.mxu0 0.0
    %1001 = vmatpush1.msra.mxu0 0.0
    %1002 = vmatprep.subr.mxu0 0.0
    %1003 = vmatpush1.msra.mxu0 0.0
    %1004 = vmatprep.subr.mxu0 0.0
    %1005 = vmatpush1.msra.mxu0 0.0
    %1006 = vmatprep.subr.mxu0 0.0
    %1007 = vmatpush1.msra.mxu0 0.0
    %1008 = vmatprep.subr.mxu0 0.0
    %1009 = vmatpush1.msra.mxu0 0.0
    %1010 = vmatprep.subr.mxu0 0.0
    %1011 = vmatpush1.msra.mxu0 0.0
    %1012 = vmatprep.subr.mxu0 0.0
    %1013 = vmatpush1.msra.mxu0 0.0
    %1014 = vmatprep.subr.mxu0 0.0
    %1015 = vmatpush1.msra.mxu0 0.0
    %1016 = vmatprep.subr.mxu0 0.0
    %1017 = vmatpush1.msra.mxu0 0.0
    %1018 = vmatprep.subr.mxu0 0.0
    %1019 = vmatpush1.msra.mxu0 0.0
    %1020 = vmatprep.subr.mxu0 0.0
    %1021 = vmatpush1.msra.mxu0 0.0
    %1022 = vmatprep.subr.mxu0 0.0
    %1023 = vmatpush1.msra.mxu0 0.0
    %1024 = vmatprep.subr.mxu0 0.0
    %1025 = vmatpush1.msra.mxu0 0.0
    %1026 = vmatprep.subr.mxu0 0.0
    %1027 = vmatpush1.msra.mxu0 0.0
    %1028 = vmatprep.subr.mxu0 0.0
    %1029 = vmatpush1.msra.mxu0 0.0
    %1030 = vmatprep.subr.mxu0 0.0
    %1031 = vmatpush1.msra.mxu0 0.0
    %1032 = vmatprep.subr.mxu0 0.0
    %1033 = vmatpush1.msra.mxu0 0.0
    %1034 = vmatprep.subr.mxu0 0.0
    %1035 = vmatpush1.msra.mxu0 0.0
    %1036 = vmatprep.subr.mxu0 0.0
    %1037 = vmatpush1.msra.mxu0 0.0
    %1038 = vmatprep.subr.mxu0 0.0
    %1039 = vmatpush1.msra.mxu0 0.0
    %1040 = vmatprep.subr.mxu0 0.0
    %1041 = vmatpush1.msra.mxu0 0.0
    %1042 = vmatprep.subr.mxu0 0.0
    %1043 = vmatpush1.msra.mxu0 0.0
    %1044 = vmatprep.subr.mxu0 0.0
    %1045 = vmatpush1.msra.mxu0 0.0
    %1046 = vmatprep.subr.mxu0 0.0
    %1047 = vmatpush1.msra.mxu0 0.0
    %1048 = vmatprep.subr.mxu0 0.0
    %1049 = vmatpush1.msra.mxu0 0.0
    %1050 = vmatprep.subr.mxu0 0.0
    %1051 = vmatpush1.msra.mxu0 0.0
    %1052 = vmatprep.subr.mxu0 0.0
    %1053 = vmatpush1.msra.mxu0 0.0
    %1054 = vmatprep.subr.mxu0 0.0
    %1055 = vmatpush1.msra.mxu0 0.0
    %1056 = vmatprep.mubr.f32.mxu0 0.0
    %v1057 = vand.u32 %v576, 4294901760
    %1058 = vmatmul.mubr.f32.gmra.mrb[0].mxu0 %v1057
    %v1059 = vpop.f32.mrb[0].mxu0
    %v1060 = vadd.f32 %v985, %v1059
    %v1061 = vpop.f32.mrb[0].mxu0
    %1062 = vdwg.mxu0
    %1063 = vst [vmem:[#allocation7] sm:$0x3] %v1060
    // Predicated region
    $region18: #{router_unit_apply.1} parent=1 // pred_check
      _
    $region19: #{router_unit_apply.1} parent=1 // pred_check_branch
      %1065 = sbr.rel (0) target = $region21
    $region20: #{router_unit_apply.1} parent=1 // pred_region
      %s1067 = ssub.s32 32, 32
      %1068 = vsyncadd [#allocation4], %s1067
      %s1070 = sshll.u32 [#allocation7], 4
      %s1071 = int_to_ptr.vmem [resolvable:$true] %s1070
      %1073 = dma.vmem_to_hbm [thread:$0]  %s1071, 32, %s2, [#allocation4]
    $region21: #{router_unit_apply.1} parent=1 // pred_fallthru
      _
    // Predicated region
    $region22: #{router_unit_apply.1} parent=1 // pred_check
      _
    $region23: #{router_unit_apply.1} parent=1 // pred_check_branch
      %1075 = sbr.rel (0) target = $region25
    $region24: #{router_unit_apply.1} parent=1 // pred_region
      %1076 = dma.done [#allocation4], 32
    $region25: #{router_unit_apply.1} parent=1 // pred_fallthru
      _
    %1077 = vsyncpa [#allocation3], 1
    %1078 = vsyncpa [#allocation6], 1
    %1079 = vsyncpa [#allocation4], 1

</llo_original>
